<compile_context>
chip_gen: v7x
topology: tpu7x:2x2x1
jax: 0.10.0
libtpu: 0.0.40
codegen_flags: <defaults>
</compile_context>

<pallas_src>
import jax
import jax.numpy as jnp
import numpy as np
from jax.experimental import pallas as pl
from jax.experimental.pallas import tpu as pltpu

BN_EPS = 1e-5
LANE = 128


def _round_up(x, m):
    return (x + m - 1) // m * m


# ---------------------------------------------------------------------------
# Pass 1: conv-as-GEMM + streaming per-core per-channel sum / sum-of-squares
# ---------------------------------------------------------------------------
def _accumulate_stats(y, sum_ref, ssq_ref):
    t, c = y.shape
    # Keep the reduction partially unreduced across 8 sublanes (native layout,
    # no extra relayout); the tiny (num_cores*8, Cout_p) result is reduced in
    # the wrapper.
    sum_ref[...] += jnp.sum(y.reshape(t // 8, 8, c), axis=0)
    ssq_ref[...] += jnp.sum((y * y).reshape(t // 8, 8, c), axis=0)


def conv_stats_kernel(x_ref, w_ref, sum_ref, ssq_ref):
    @pl.when(pl.program_id(1) == 0)
    def _init():
        sum_ref[...] = jnp.zeros_like(sum_ref)
        ssq_ref[...] = jnp.zeros_like(ssq_ref)

    y = jnp.dot(x_ref[...], w_ref[...], preferred_element_type=jnp.float32)
    _accumulate_stats(y, sum_ref, ssq_ref)


def conv_stats_y_kernel(x_ref, w_ref, y_ref, sum_ref, ssq_ref):
    @pl.when(pl.program_id(1) == 0)
    def _init():
        sum_ref[...] = jnp.zeros_like(sum_ref)
        ssq_ref[...] = jnp.zeros_like(ssq_ref)

    y = jnp.dot(x_ref[...], w_ref[...], preferred_element_type=jnp.float32)
    y_ref[...] = y.astype(y_ref.dtype)          # bf16 intermediate (half bytes)
    _accumulate_stats(y, sum_ref, ssq_ref)


# ---------------------------------------------------------------------------
# Pass 2: either recompute GEMM + affine, or affine over the bf16 intermediate
# ---------------------------------------------------------------------------
def conv_affine_kernel(x_ref, w_ref, scale_ref, shift_ref, o_ref):
    y = jnp.dot(x_ref[...], w_ref[...], preferred_element_type=jnp.float32)
    o_ref[...] = (y * scale_ref[...] + shift_ref[...]).astype(o_ref.dtype)


def bn_apply_kernel(y_ref, scale_ref, shift_ref, o_ref):
    y = y_ref[...].astype(jnp.float32)
    o_ref[...] = (y * scale_ref[...] + shift_ref[...]).astype(o_ref.dtype)


# ---------------------------------------------------------------------------
# Tile-size / VMEM budgeting
# ---------------------------------------------------------------------------
def _pick_tile_rows(rows, K_p, Cout_p, x_bytes, y_bytes, out_bytes,
                    use_recompute, vmem_limit):
    budget = int(vmem_limit * 0.7)          # headroom for internal scratch

    def footprint(t):
        w_buf = 2 * K_p * Cout_p * x_bytes          # weights (double-buffered)
        x_buf = 2 * t * K_p * x_bytes               # input tile (double-buffered)
        acc = t * Cout_p * 4                        # f32 matmul result
        stats = 4 * 8 * Cout_p * 4
        if use_recompute:
            p1 = x_buf + w_buf + acc + stats
            p2 = x_buf + w_buf + acc + 2 * t * Cout_p * out_bytes
        else:
            p1 = x_buf + w_buf + acc + stats + 2 * t * Cout_p * y_bytes
            p2 = 2 * t * Cout_p * y_bytes + acc + 2 * t * Cout_p * out_bytes
        return max(p1, p2)

    t_rows = 128
    for cand in range(2048, 127, -128):
        if footprint(cand) <= budget:
            t_rows = cand
            break
    # Avoid excessive zero padding on small problems while keeping >= 2 tiles
    # for the per-core stats split.
    t_rows = min(t_rows, max(128, _round_up(-(-rows // 2), 128)))
    return t_rows


# ---------------------------------------------------------------------------
# Wrapper
# ---------------------------------------------------------------------------
def conv_bn_forward(x_nchw, w_oihw, gamma, beta, *, compute_dtype=jnp.bfloat16):
    """PyTorch-equivalent ConvBN forward (training-mode batch statistics).

    x: NCHW, w: OIHW, returns NCHW.
    """
    N, Cin, H, W = x_nchw.shape
    Cout, _, KH, KW = w_oihw.shape
    pad = KH // 2                       # nn.Conv2d(padding=kernel_size // 2), stride 1

    out_dtype = x_nchw.dtype
    x_bytes = jnp.dtype(compute_dtype).itemsize
    out_bytes = jnp.dtype(out_dtype).itemsize
    y_bytes = 2                         # bf16 intermediate when kept

    # ---- generation-aware VMEM budget --------------------------------------
    try:
        vmem_cap = int(pltpu.get_tpu_info().vmem_capacity_bytes)
    except Exception:
        vmem_cap = 64 * 1024 * 1024     # conservative (v7x) fallback
    vmem_limit = max(32 * 1024 * 1024, min(vmem_cap * 3 // 4, 96 * 1024 * 1024))

    # ---- wrapper-side layout plumbing (bf16 im2col) -------------------------
    x_nhwc = jnp.transpose(x_nchw, (0, 2, 3, 1)).astype(compute_dtype)
    x_padded = jnp.pad(x_nhwc, ((0, 0), (pad, pad), (pad, pad), (0, 0)))
    OH = H + 2 * pad - KH + 1
    OW = W + 2 * pad - KW + 1
    patches = jnp.concatenate(
        [x_padded[:, kh:kh + OH, kw:kw + OW, :]
         for kh in range(KH) for kw in range(KW)], axis=-1)
    K = KH * KW * Cin
    rows = N * OH * OW
    x_col = patches.reshape(rows, K)

    # sublane-aligned contracting dim; lane-dense output channels
    k_align = 16 if x_bytes == 2 else 8
    K_p = _round_up(K, k_align)
    Cout_p = _round_up(Cout, LANE)
    w_col = jnp.transpose(w_oihw, (2, 3, 1, 0)).reshape(K, Cout)    # (kh,kw,cin) rows
    w_col = jnp.pad(w_col, ((0, K_p - K), (0, Cout_p - Cout))).astype(compute_dtype)

    # Keep the y intermediate only if re-reading x_col in pass 2 would cost more.
    use_recompute = K_p * x_bytes <= 2 * Cout_p * y_bytes

    t_rows = _pick_tile_rows(rows, K_p, Cout_p, x_bytes, y_bytes, out_bytes,
                             use_recompute, vmem_limit)
    num_cores = 2                         # v7x megacore split; serial on v5e/v6e
    rows_p = _round_up(rows, num_cores * t_rows)
    n_tiles = rows_p // t_rows
    tiles_per_core = n_tiles // num_cores

    x_col = jnp.pad(x_col, ((0, rows_p - rows), (0, K_p - K)))

    # ---- pass 1: conv + global stats accumulation ---------------------------
    x_map = lambda c, i: (c * tiles_per_core + i, 0)
    w_map1 = lambda c, i: (0, 0)
    stat_spec = pl.BlockSpec((8, Cout_p), lambda c, i: (c, 0))   # per-core resident
    p1_in_specs = [pl.BlockSpec((t_rows, K_p), x_map),
                   pl.BlockSpec((K_p, Cout_p), w_map1)]
    p1_flops = 2 * rows_p * K_p * Cout_p
    p1_bytes = (rows_p * K_p * x_bytes + K_p * Cout_p * x_bytes
                + 2 * num_cores * 8 * Cout_p * 4)
    p1_params = pltpu.CompilerParams(
        dimension_semantics=("parallel", "arbitrary"),
        vmem_limit_bytes=vmem_limit)

    y_bf16 = None
    if use_recompute:
        csum8, cssq8 = pl.pallas_call(
            conv_stats_kernel,
            out_shape=(
                jax.ShapeDtypeStruct((num_cores * 8, Cout_p), jnp.float32),
                jax.ShapeDtypeStruct((num_cores * 8, Cout_p), jnp.float32),
            ),
            grid=(num_cores, tiles_per_core),
            in_specs=p1_in_specs,
            out_specs=(stat_spec, stat_spec),
            compiler_params=p1_params,
            cost_estimate=pl.CostEstimate(flops=p1_flops, transcendentals=0,
                                          bytes_accessed=p1_bytes),
        )(x_col, w_col)
    else:
        y_bf16, csum8, cssq8 = pl.pallas_call(
            conv_stats_y_kernel,
            out_shape=(
                jax.ShapeDtypeStruct((rows_p, Cout_p), jnp.bfloat16),
                jax.ShapeDtypeStruct((num_cores * 8, Cout_p), jnp.float32),
                jax.ShapeDtypeStruct((num_cores * 8, Cout_p), jnp.float32),
            ),
            grid=(num_cores, tiles_per_core),
            in_specs=p1_in_specs,
            out_specs=(pl.BlockSpec((t_rows, Cout_p), x_map), stat_spec, stat_spec),
            compiler_params=p1_params,
            cost_estimate=pl.CostEstimate(
                flops=p1_flops, transcendentals=0,
                bytes_accessed=p1_bytes + rows_p * Cout_p * y_bytes),
        )(x_col, w_col)

    # ---- fold BN into per-channel scale/shift (tiny, plain JAX) -------------
    cnt = jnp.float32(rows)               # padded rows contribute exactly 0
    csum = csum8.reshape(num_cores, 8, Cout_p).sum(axis=(0, 1))
    cssq = cssq8.reshape(num_cores, 8, Cout_p).sum(axis=(0, 1))
    mean = csum / cnt
    # TODO(synk): E[y^2]-E[y]^2 can cancel for very large N*H*W; a shifted /
    #             Welford-style accumulation would be more robust.
    var = jnp.maximum(cssq / cnt - mean * mean, 0.0)   # biased var (torch forward)
    gamma_p = jnp.pad(gamma.astype(jnp.float32), (0, Cout_p - Cout),
                      constant_values=1.0)
    beta_p = jnp.pad(beta.astype(jnp.float32), (0, Cout_p - Cout))
    inv_std = jax.lax.rsqrt(var + BN_EPS)
    scale = (gamma_p * inv_std).reshape(1, Cout_p)
    shift = (beta_p - mean * gamma_p * inv_std).reshape(1, Cout_p)

    # ---- pass 2: normalized output ------------------------------------------
    p2_params = pltpu.CompilerParams(
        dimension_semantics=("parallel",),
        vmem_limit_bytes=vmem_limit)

    if use_recompute:
        p2_bytes = (rows_p * K_p * x_bytes + K_p * Cout_p * x_bytes
                    + rows_p * Cout_p * out_bytes)
        out_flat = pl.pallas_call(
            conv_affine_kernel,
            out_shape=jax.ShapeDtypeStruct((rows_p, Cout_p), out_dtype),
            grid=(n_tiles,),
            in_specs=[
                pl.BlockSpec((t_rows, K_p), lambda i: (i, 0)),
                pl.BlockSpec((K_p, Cout_p), lambda i: (0, 0)),
                pl.BlockSpec((1, Cout_p), lambda i: (0, 0)),
                pl.BlockSpec((1, Cout_p), lambda i: (0, 0)),
            ],
            out_specs=pl.BlockSpec((t_rows, Cout_p), lambda i: (i, 0)),
            compiler_params=p2_params,
            cost_estimate=pl.CostEstimate(flops=2 * rows_p * K_p * Cout_p,
                                          transcendentals=0,
                                          bytes_accessed=p2_bytes),
        )(x_col, w_col, scale, shift)
    else:
        p2_bytes = rows_p * Cout_p * (y_bytes + out_bytes)
        out_flat = pl.pallas_call(
            bn_apply_kernel,
            out_shape=jax.ShapeDtypeStruct((rows_p, Cout_p), out_dtype),
            grid=(n_tiles,),
            in_specs=[
                pl.BlockSpec((t_rows, Cout_p), lambda i: (i, 0)),
                pl.BlockSpec((1, Cout_p), lambda i: (0, 0)),
                pl.BlockSpec((1, Cout_p), lambda i: (0, 0)),
            ],
            out_specs=pl.BlockSpec((t_rows, Cout_p), lambda i: (i, 0)),
            compiler_params=p2_params,
            cost_estimate=pl.CostEstimate(flops=0, transcendentals=0,
                                          bytes_accessed=p2_bytes),
        )(y_bf16, scale, shift)

    out_nhwc = out_flat[:rows, :Cout].reshape(N, OH, OW, Cout)
    return jnp.transpose(out_nhwc, (0, 3, 1, 2))           # back to NCHW


def reference_conv_bn(x_nchw, w_oihw, gamma, beta):
    y = jax.lax.conv_general_dilated(
        x_nchw, w_oihw, window_strides=(1, 1), padding=((1, 1), (1, 1)),
        dimension_numbers=("NCHW", "OIHW", "NCHW"))
    mean = y.mean(axis=(0, 2, 3), keepdims=True)
    var = ((y - mean) ** 2).mean(axis=(0, 2, 3), keepdims=True)
    return ((y - mean) / jnp.sqrt(var + BN_EPS)
            * gamma.reshape(1, -1, 1, 1) + beta.reshape(1, -1, 1, 1))


if __name__ == "__main__":
    # Deterministic synthetic parameters/inputs (no checkpoint loading).
    key = jax.random.PRNGKey(0)
    kx, kw, kg, kb = jax.random.split(key, 4)

    N, Cin, H, W = 2, 4, 16, 16
    Cout, Ksz = 8, 3

    x = jax.random.normal(kx, (N, Cin, H, W), dtype=jnp.float32)
    w = jax.random.normal(kw, (Cout, Cin, Ksz, Ksz), dtype=jnp.float32) * 0.1
    gamma = 1.0 + 0.1 * jax.random.normal(kg, (Cout,), dtype=jnp.float32)
    beta = 0.1 * jax.random.normal(kb, (Cout,), dtype=jnp.float32)

    out = conv_bn_forward(x, w, gamma, beta)
    out = jax.block_until_ready(out)

    ref = reference_conv_bn(x, w, gamma, beta)
    # Tolerance loosened vs. a pure-f32 path because GEMM operands are bf16
    # (f32 MXU accumulation) per the performance review.
    np.testing.assert_allclose(np.asarray(out), np.asarray(ref),
                               rtol=5e-2, atol=5e-2)

    print("KERNEL_OK")
</pallas_src>

<mosaic_0001>
module attributes {stable_mosaic.version = 11 : i64} {
  func.func @conv_stats_kernel(%arg0: i32, %arg1: i32, %arg2: memref<256x48xbf16, #tpu.memory_space<vmem>>, %arg3: memref<48x128xbf16, #tpu.memory_space<vmem>>, %arg4: memref<8x128xf32, #tpu.memory_space<vmem>>, %arg5: memref<8x128xf32, #tpu.memory_space<vmem>>) attributes {dimension_semantics = [#tpu.dimension_semantics<parallel>, #tpu.dimension_semantics<arbitrary>], iteration_bounds = array<i64: 2, 1>, scalar_prefetch = 0 : i64, scratch_operands = 0 : i64, tpu.core_type = #tpu.core_type<tc>, window_params = [{transform_indices = @transform_0, window_bounds = array<i64: 256, 48>}, {pipeline_mode = #tpu.pipeline_mode<synchronous>, transform_indices = @transform_1, window_bounds = array<i64: 48, 128>}, {transform_indices = @transform_2, window_bounds = array<i64: 8, 128>}, {transform_indices = @transform_3, window_bounds = array<i64: 8, 128>}]} {
    %c0_i32 = arith.constant 0 : i32
    %0 = arith.cmpi eq, %arg1, %c0_i32 : i32
    %1 = arith.extui %0 : i1 to i32
    %c0_i32_0 = arith.constant 0 : i32
    %2 = arith.cmpi ne, %1, %c0_i32_0 : i32
    scf.if %2 {
      %cst_14 = arith.constant 0.000000e+00 : f32
      %17 = vector.broadcast %cst_14 : f32 to vector<8x128xf32>
      %c0_15 = arith.constant 0 : index
      %c0_16 = arith.constant 0 : index
      %18 = vector.load %arg4[%c0_15, %c0_16] : memref<8x128xf32, #tpu.memory_space<vmem>>, vector<8x128xf32>
      tpu.vector_store %arg4[%c0_15, %c0_16], %17 {strides = array<i32>} : memref<8x128xf32, #tpu.memory_space<vmem>>, vector<8x128xf32>,
      %cst_17 = arith.constant 0.000000e+00 : f32
      %19 = vector.broadcast %cst_17 : f32 to vector<8x128xf32>
      %c0_18 = arith.constant 0 : index
      %c0_19 = arith.constant 0 : index
      %20 = vector.load %arg5[%c0_18, %c0_19] : memref<8x128xf32, #tpu.memory_space<vmem>>, vector<8x128xf32>
      tpu.vector_store %arg5[%c0_18, %c0_19], %19 {strides = array<i32>} : memref<8x128xf32, #tpu.memory_space<vmem>>, vector<8x128xf32>,
    } else {
    }
    %c0 = arith.constant 0 : index
    %c0_1 = arith.constant 0 : index
    %3 = vector.load %arg2[%c0, %c0_1] : memref<256x48xbf16, #tpu.memory_space<vmem>>, vector<256x48xbf16>
    %c0_2 = arith.constant 0 : index
    %c0_3 = arith.constant 0 : index
    %4 = vector.load %arg3[%c0_2, %c0_3] : memref<48x128xbf16, #tpu.memory_space<vmem>>, vector<48x128xbf16>
    %cst = arith.constant dense<0.000000e+00> : vector<256x128xf32>
    %5 = tpu.matmul %3, %4, %cst {dimension_numbers = #tpu.dot_dimension_numbers<[1], [0], [0], [1], [0, 0, 1, 1], [], []>} : vector<256x48xbf16>, vector<48x128xbf16>, vector<256x128xf32> -> vector<256x128xf32>
    %c0_4 = arith.constant 0 : index
    %c0_5 = arith.constant 0 : index
    %6 = vector.load %arg4[%c0_4, %c0_5] : memref<8x128xf32, #tpu.memory_space<vmem>>, vector<8x128xf32>
    %7 = vector.shape_cast %5 : vector<256x128xf32> to vector<32x8x128xf32>
    %cst_6 = arith.constant dense<0.000000e+00> : vector<8x128xf32>
    %8 = vector.multi_reduction <add>, %7, %cst_6 [0] : vector<32x8x128xf32> to vector<8x128xf32>
    %9 = arith.addf %6, %8 : vector<8x128xf32>
    %c0_7 = arith.constant 0 : index
    %c0_8 = arith.constant 0 : index
    %10 = vector.load %arg4[%c0_7, %c0_8] : memref<8x128xf32, #tpu.memory_space<vmem>>, vector<8x128xf32>
    tpu.vector_store %arg4[%c0_7, %c0_8], %9 {strides = array<i32>} : memref<8x128xf32, #tpu.memory_space<vmem>>, vector<8x128xf32>,
    %c0_9 = arith.constant 0 : index
    %c0_10 = arith.constant 0 : index
    %11 = vector.load %arg5[%c0_9, %c0_10] : memref<8x128xf32, #tpu.memory_space<vmem>>, vector<8x128xf32>
    %12 = arith.mulf %5, %5 : vector<256x128xf32>
    %13 = vector.shape_cast %12 : vector<256x128xf32> to vector<32x8x128xf32>
    %cst_11 = arith.constant dense<0.000000e+00> : vector<8x128xf32>
    %14 = vector.multi_reduction <add>, %13, %cst_11 [0] : vector<32x8x128xf32> to vector<8x128xf32>
    %15 = arith.addf %11, %14 : vector<8x128xf32>
    %c0_12 = arith.constant 0 : index
    %c0_13 = arith.constant 0 : index
    %16 = vector.load %arg5[%c0_12, %c0_13] : memref<8x128xf32, #tpu.memory_space<vmem>>, vector<8x128xf32>
    tpu.vector_store %arg5[%c0_12, %c0_13], %15 {strides = array<i32>} : memref<8x128xf32, #tpu.memory_space<vmem>>, vector<8x128xf32>,
    return
  }
  func.func @transform_0(%arg0: i32, %arg1: i32) -> (i32, i32) {
    %c1_i32 = arith.constant 1 : i32
    %0 = arith.muli %arg0, %c1_i32 : i32
    %1 = arith.addi %0, %arg1 : i32
    %c0_i32 = arith.constant 0 : i32
    %c0_i32_0 = arith.constant 0 : i32
    return %1, %c0_i32 : i32, i32
  }
  func.func @transform_1(%arg0: i32, %arg1: i32) -> (i32, i32) {
    %c0_i32 = arith.constant 0 : i32
    %c0_i32_0 = arith.constant 0 : i32
    %c0_i32_1 = arith.constant 0 : i32
    return %c0_i32, %c0_i32_0 : i32, i32
  }
  func.func @transform_2(%arg0: i32, %arg1: i32) -> (i32, i32) {
    %c0_i32 = arith.constant 0 : i32
    %c0_i32_0 = arith.constant 0 : i32
    return %arg0, %c0_i32 : i32, i32
  }
  func.func @transform_3(%arg0: i32, %arg1: i32) -> (i32, i32) {
    %c0_i32 = arith.constant 0 : i32
    %c0_i32_0 = arith.constant 0 : i32
    return %arg0, %c0_i32 : i32, i32
  }
}

</mosaic_0001>

<llo_original>
// kernel: tpu_custom_call.1
$region0: #{tpu_custom_call.1}
  #allocation0 [shape = 'u32[]', space=smem, size = 0x4, offset = 0x4, fixed_abs, tag = 'smem constant byte address 0x4 - core index']
  #allocation1 [shape = 'u32[144,128]{1,0:T(1,128)}', space=vmem, size = 0x12000, scoped, tag = 'internal scratch']
  %s0 = inlined_call_operand.vmem [shape: bf16[512,48], index: 0, kind: input, shape index: {}]
  %s1 = inlined_call_operand.vmem [shape: bf16[48,128], index: 1, kind: input, shape index: {}]
  %s2 = inlined_call_operand.hbm [shape: f32[16,128], index: 2, kind: output, shape index: {0}]
  %s3 = inlined_call_operand.hbm [shape: f32[16,128], index: 3, kind: output, shape index: {1}]
  %4 = xla_tuple %s2, %s3
  %s5 = sld [smem:[#allocation0]]
  $region53: #{tpu_custom_call.1} parent=0
    _
  %s7 = ssub.s32 1, %s5
  %s8 = scalar_select 0, %s7, %s5
  $region1: #{tpu_custom_call.1} parent=0
    #allocation2 [shape = 'u8[8192]{0}', space=vmem, size = 0x2000, scoped, tag = 'output window, operand 0']
    #allocation3 [shape = 's32[2]{0}', space=sflag, size = 0x8, scoped, tag = 'scoped memory for tpu_custom_call.1']
    #allocation4 [shape = 'u8[8192]{0}', space=vmem, size = 0x2000, scoped, tag = 'output window, operand 1']
    #allocation5 [shape = 's32[2]{0}', space=sflag, size = 0x8, scoped, tag = 'scoped memory for tpu_custom_call.1']
    %9 = vsyncpa [#allocation3], 0
    %s10 = scalar_lea.sflag [#allocation3], 1
    %11 = vsyncpa %s10, 0
    %12 = vsyncpa [#allocation5], 0
    %s13 = scalar_lea.sflag [#allocation5], 1
    %14 = vsyncpa %s13, 0
    loop: start=0, step=1, limit=4
    $region2: #{tpu_custom_call.1} parent=1 // loop_pre_header
      _
    $region3: #{tpu_custom_call.1} parent=1 // loop_header
      %s16 = sphi 0, %s20
      %p17 = scmp.ge.s32.totalorder %s16, 4
      %s23 = sphi 0, %s35
      %s24 = sphi 0, %s31
      %s25 = sphi 0, %s23
      %s26 = sphi 0, %s24
      %s27 = sphi 0, %s25
      %s28 = sphi 0, %s26
      %s40 = sphi 0, %s42
      %s43 = sphi 0, %s40
      %s44 = sphi 0, %s43
      %s60 = sphi 0, %s44
      %s64 = sphi 0, %s64
      %s66 = sphi 0, %s64
      %s67 = sphi 0, %s66
      %s81 = sphi 0, %s67
      %s87 = sphi 0, %s89
      %s90 = sphi 0, %s87
      %s91 = sphi 0, %s90
      %s107 = sphi 0, %s91
      %s113 = sphi 0, %s115
      %s116 = sphi 0, %s113
      %s117 = sphi 0, %s116
      %s133 = sphi 0, %s117
    $region4: #{tpu_custom_call.1} parent=1 // loop_header_branch
      %19 = sbr.rel (%p17) target = $region8
    $region5: #{tpu_custom_call.1} parent=1 // loop_body
      %s21 = ssub.s32 %s16, 1
      %s22 = ssub.s32 %s16, 2
      %s29 = sadd.s32 1, %s24
      %p30 = scmp.ge.s32.totalorder %s29, 1
      %s31 = scalar_select %p30, 0, %s29
      %s32 = sadd.s32 1, %s23
      %s33 = scalar_select %p30, %s32, %s23
      %p34 = scmp.ge.s32.totalorder %s33, 2
      %s35 = scalar_select %p34, 0, %s33
      %s36 = sadd.s32 %s23, %s24
      %s37 = sadd.s32 %s35, %s31
      %s38 = ssub.s32 %s36, %s37
      %p39 = scmp.eq.s32.totalorder %s38, 0
      %s41 = sadd.s32 %s40, 1
      %s42 = scalar_select %p39, %s40, %s41
      %p45 = pneg %p39
      %p46 = scmp.eq.s32.totalorder %s16, 1
      %p47 = por %p45, %p46
      %p48 = scmp.ne.s32.totalorder %s40, %s43
      %p49 = scmp.eq.s32.totalorder %s16, 0
      %p50 = por %p48, %p49
      %p51 = scmp.ne.s32.totalorder %s40, %s43
      %p52 = scmp.eq.s32.totalorder %s21, 1
      %p53 = por %p51, %p52
      %p54 = scmp.ne.s32.totalorder %s43, %s44
      %p55 = scmp.eq.s32.totalorder %s21, 0
      %p56 = por %p54, %p55
      %p57 = scmp.ne.s32.totalorder %s43, %s44
      %p58 = scmp.eq.s32.totalorder %s22, 1
      %p59 = por %p57, %p58
      %p61 = scmp.ne.s32.totalorder %s44, %s60
      %p62 = scmp.eq.s32.totalorder %s22, 0
      %p63 = por %p61, %p62
      %s65 = sadd.s32 %s64, 1
      %p68 = scmp.eq.s32.totalorder %s16, 1
      %p69 = scmp.ne.s32.totalorder %s64, %s66
      %p70 = scmp.eq.s32.totalorder %s16, 0
      %p71 = por %p69, %p70
      %p72 = scmp.ne.s32.totalorder %s64, %s66
      %p73 = scmp.eq.s32.totalorder %s21, 1
      %p74 = por %p72, %p73
      %p75 = scmp.ne.s32.totalorder %s66, %s67
      %p76 = scmp.eq.s32.totalorder %s21, 0
      %p77 = por %p75, %p76
      %p78 = scmp.ne.s32.totalorder %s66, %s67
      %p79 = scmp.eq.s32.totalorder %s22, 1
      %p80 = por %p78, %p79
      %p82 = scmp.ne.s32.totalorder %s67, %s81
      %p83 = scmp.eq.s32.totalorder %s22, 0
      %p84 = por %p82, %p83
      %s85 = ssub.s32 %s23, %s35
      %p86 = scmp.eq.s32.totalorder %s85, 0
      %s88 = sadd.s32 %s87, 1
      %s89 = scalar_select %p86, %s87, %s88
      %p92 = pneg %p86
      %p93 = scmp.eq.s32.totalorder %s16, 1
      %p94 = por %p92, %p93
      %p95 = scmp.ne.s32.totalorder %s87, %s90
      %p96 = scmp.eq.s32.totalorder %s16, 0
      %p97 = por %p95, %p96
      %p98 = scmp.ne.s32.totalorder %s87, %s90
      %p99 = scmp.eq.s32.totalorder %s21, 1
      %p100 = por %p98, %p99
      %p101 = scmp.ne.s32.totalorder %s90, %s91
      %p102 = scmp.eq.s32.totalorder %s21, 0
      %p103 = por %p101, %p102
      %p104 = scmp.ne.s32.totalorder %s90, %s91
      %p105 = scmp.eq.s32.totalorder %s22, 1
      %p106 = por %p104, %p105
      %p108 = scmp.ne.s32.totalorder %s91, %s107
      %p109 = scmp.eq.s32.totalorder %s22, 0
      %p110 = por %p108, %p109
      %s111 = ssub.s32 %s23, %s35
      %p112 = scmp.eq.s32.totalorder %s111, 0
      %s114 = sadd.s32 %s113, 1
      %s115 = scalar_select %p112, %s113, %s114
      %p118 = pneg %p112
      %p119 = scmp.eq.s32.totalorder %s16, 1
      %p120 = por %p118, %p119
      %p121 = scmp.ne.s32.totalorder %s113, %s116
      %p122 = scmp.eq.s32.totalorder %s16, 0
      %p123 = por %p121, %p122
      %p124 = scmp.ne.s32.totalorder %s113, %s116
      %p125 = scmp.eq.s32.totalorder %s21, 1
      %p126 = por %p124, %p125
      %p127 = scmp.ne.s32.totalorder %s116, %s117
      %p128 = scmp.eq.s32.totalorder %s21, 0
      %p129 = por %p127, %p128
      %p130 = scmp.ne.s32.totalorder %s116, %s117
      %p131 = scmp.eq.s32.totalorder %s22, 1
      %p132 = por %p130, %p131
      %p134 = scmp.ne.s32.totalorder %s117, %s133
      %p135 = scmp.eq.s32.totalorder %s22, 0
      %p136 = por %p134, %p135
      %p137 = scmp.le.s32.totalorder 1, %s16
      %p138 = scmp.lt.s32.totalorder %s16, 3
      %p139 = pnand %p137, %p138
      %p140 = pneg %p139
      // Predicated region
      $region9: #{tpu_custom_call.1} parent=5 // pred_check
        _
      $region10: #{tpu_custom_call.1} parent=5 // pred_check_branch
        %142 = sbr.rel (%p139) target = $region12
      $region11: #{tpu_custom_call.1} parent=5 // pred_region
        %s143 = ssub.s32 %s16, 1
        // Predicated region
        $region13: #{tpu_custom_call.1} parent=11 // pred_check
          %p144 = pneg %p77
        $region14: #{tpu_custom_call.1} parent=11 // pred_check_branch
          %146 = sbr.rel (%p144) target = $region16
        $region15: #{tpu_custom_call.1} parent=11 // pred_region
          _
        $region16: #{tpu_custom_call.1} parent=11 // pred_fallthru
          _
      $region12: #{tpu_custom_call.1} parent=5 // pred_fallthru
        _
      %p147 = scmp.lt.s32.totalorder %s16, 2
      // Predicated region
      $region17: #{tpu_custom_call.1} parent=5 // pred_check
        %p148 = pneg %p147
      $region18: #{tpu_custom_call.1} parent=5 // pred_check_branch
        %150 = sbr.rel (%p148) target = $region20
      $region19: #{tpu_custom_call.1} parent=5 // pred_region
        // Predicated region
        $region21: #{tpu_custom_call.1} parent=19 // pred_check
          %p151 = pneg %p50
        $region22: #{tpu_custom_call.1} parent=19 // pred_check_branch
          %153 = sbr.rel (%p151) target = $region24
        $region23: #{tpu_custom_call.1} parent=19 // pred_region
          %s154 = sadd.s32 %s23, %s24
          %s155 = smul.u32 32, %s154
          %p156 = scmp.lt.s32.totalorder %s155, 63
          %s157 = scalar_select %p156, %s155, 63
          %s158 = smul.addr %s157, 4
          %s159 = scalar_lea.vmem %s0, %s158
          %s160 = sadd.s32 %s23, %s24
          %s161 = smul.u32 32, %s160
        $region24: #{tpu_custom_call.1} parent=19 // pred_fallthru
          _
      $region20: #{tpu_custom_call.1} parent=5 // pred_fallthru
        _
      %p162 = scmp.le.s32.totalorder 1, %s16
      %p163 = scmp.lt.s32.totalorder %s16, 3
      %p164 = pnand %p162, %p163
      %p165 = pneg %p164
      // Predicated region
      $region25: #{tpu_custom_call.1} parent=5 // pred_check
        _
      $region26: #{tpu_custom_call.1} parent=5 // pred_check_branch
        %167 = sbr.rel (%p164) target = $region28
      $region27: #{tpu_custom_call.1} parent=5 // pred_region
        %s168 = ssub.s32 %s16, 1
        %s169 = sadd.s32 %s25, %s26
        %s170 = smul.u32 32, %s169
        %p171 = scmp.lt.s32.totalorder %s170, 63
        %s172 = scalar_select %p171, %s170, 63
        %s173 = smul.addr %s172, 4
        %s174 = scalar_lea.vmem %s0, %s173
        %p175 = pneg %p56
        %p176 = pneg %p53
        %p177 = pneg %p77
        %p178 = pneg %p74
        %p179 = pneg %p103
        %p180 = pneg %p100
        %s181 = sand.u32 %s90, 1
        %s182 = scalar_lea.sflag [#allocation3], %s181
        %s183 = sand.u32 %s90, 1
        %s184 = smul.addr %s183, 8
        %s185 = scalar_lea.vmem [#allocation2], %s184
        %p186 = pneg %p129
        %p187 = pneg %p126
        %s188 = sand.u32 %s116, 1
        %s189 = scalar_lea.sflag [#allocation5], %s188
        %s190 = sand.u32 %s116, 1
        %s191 = smul.addr %s190, 8
        %s192 = scalar_lea.vmem [#allocation4], %s191
        %s193 = sadd.s32 %s25, %s26
        %s194 = smul.u32 32, %s193
        %p195 = scmp.lt.s32.totalorder %s194, 63
        %s196 = scalar_select %p195, %s194, 63
        %s197 = smul.addr %s196, 4
        %s198 = scalar_lea.vmem %s0, %s197
        %s199 = sadd.s32 %s25, %s26
        %s200 = smul.u32 32, %s199
        %p202 = scmp.eq.s32.totalorder %s26, 0
        // Predicated region
        $region29: #{tpu_custom_call.1} parent=27 // pred_check
          %p203 = pneg %p202
        $region30: #{tpu_custom_call.1} parent=27 // pred_check_branch
          %205 = sbr.rel (%p203) target = $region32
        $region31: #{tpu_custom_call.1} parent=27 // pred_region
          %206 = vst [vmem:[%s185] sm:$0xff] 0.0
          %207 = vst [vmem:[%s192] sm:$0xff] 0.0
        $region32: #{tpu_custom_call.1} parent=27 // pred_fallthru
          _
        %v208 = vld [vmem:[%s198] sm:$0xf]
        %v209 = vld [vmem:[%s198 + $0x4] sm:$0xf]
        %v210 = vld [vmem:[%s198 + $0x8] sm:$0xf]
        %v211 = vld [vmem:[%s198 + $0xc] sm:$0xf]
        %v212 = vld [vmem:[%s198 + $0x10] sm:$0xf]
        %v213 = vld [vmem:[%s198 + $0x14] sm:$0xf]
        %v214 = vld [vmem:[%s198 + $0x18] sm:$0xf]
        %v215 = vld [vmem:[%s198 + $0x1c] sm:$0xf]
        %v216 = vld [vmem:[%s198 + $0x20] sm:$0xf]
        %v217 = vld [vmem:[%s198 + $0x24] sm:$0xf]
        %v218 = vld [vmem:[%s198 + $0x28] sm:$0xf]
        %v219 = vld [vmem:[%s198 + $0x2c] sm:$0xf]
        %v220 = vld [vmem:[%s198 + $0x30] sm:$0xf]
        %v221 = vld [vmem:[%s198 + $0x34] sm:$0xf]
        %v222 = vld [vmem:[%s198 + $0x38] sm:$0xf]
        %v223 = vld [vmem:[%s198 + $0x3c] sm:$0xf]
        %v224 = vld [vmem:[%s198 + $0x40] sm:$0xf]
        %v225 = vld [vmem:[%s198 + $0x44] sm:$0xf]
        %v226 = vld [vmem:[%s198 + $0x48] sm:$0xf]
        %v227 = vld [vmem:[%s198 + $0x4c] sm:$0xf]
        %v228 = vld [vmem:[%s198 + $0x50] sm:$0xf]
        %v229 = vld [vmem:[%s198 + $0x54] sm:$0xf]
        %v230 = vld [vmem:[%s198 + $0x58] sm:$0xf]
        %v231 = vld [vmem:[%s198 + $0x5c] sm:$0xf]
        %v232 = vld [vmem:[%s198 + $0x60] sm:$0xf]
        %v233 = vld [vmem:[%s198 + $0x64] sm:$0xf]
        %v234 = vld [vmem:[%s198 + $0x68] sm:$0xf]
        %v235 = vld [vmem:[%s198 + $0x6c] sm:$0xf]
        %v236 = vld [vmem:[%s198 + $0x70] sm:$0xf]
        %v237 = vld [vmem:[%s198 + $0x74] sm:$0xf]
        %v238 = vld [vmem:[%s198 + $0x78] sm:$0xf]
        %v239 = vld [vmem:[%s198 + $0x7c] sm:$0xf]
        %v240 = vld [vmem:[%s1] sm:$0xf]
        %v241 = vld [vmem:[%s1 + $0x4] sm:$0xf]
        %v242 = vld [vmem:[%s1 + $0x8] sm:$0xf]
        %v243 = vld [vmem:[%s1 + $0xc] sm:$0xf]
        %v244 = vld [vmem:[%s1 + $0x10] sm:$0xf]
        %v245 = vld [vmem:[%s1 + $0x14] sm:$0xf]
        %v278 = vunpack.c.l.b16 %v208
        %v279 = vunpack.c.l.b16 %v209
        %v280 = vunpack.c.l.b16 %v210
        %v281 = vunpack.c.l.b16 %v211
        %v282 = vunpack.c.l.b16 %v212
        %v283 = vunpack.c.l.b16 %v213
        %v284 = vunpack.c.l.b16 %v214
        %v285 = vunpack.c.l.b16 %v215
        %v286 = vunpack.c.l.b16 %v216
        %v287 = vunpack.c.l.b16 %v217
        %v288 = vunpack.c.l.b16 %v218
        %v289 = vunpack.c.l.b16 %v219
        %v290 = vunpack.c.l.b16 %v220
        %v291 = vunpack.c.l.b16 %v221
        %v292 = vunpack.c.l.b16 %v222
        %v293 = vunpack.c.l.b16 %v223
        %v294 = vunpack.c.l.b16 %v224
        %v295 = vunpack.c.l.b16 %v225
        %v296 = vunpack.c.l.b16 %v226
        %v297 = vunpack.c.l.b16 %v227
        %v298 = vunpack.c.l.b16 %v228
        %v299 = vunpack.c.l.b16 %v229
        %v300 = vunpack.c.l.b16 %v230
        %v301 = vunpack.c.l.b16 %v231
        %v302 = vunpack.c.l.b16 %v232
        %v303 = vunpack.c.l.b16 %v233
        %v304 = vunpack.c.l.b16 %v234
        %v305 = vunpack.c.l.b16 %v235
        %v306 = vunpack.c.l.b16 %v236
        %v307 = vunpack.c.l.b16 %v237
        %v308 = vunpack.c.l.b16 %v238
        %v309 = vunpack.c.l.b16 %v239
        %v310 = vpack.c.b16 %v279, %v278
        %v311 = vpack.c.b16 %v281, %v280
        %v312 = vpack.c.b16 %v283, %v282
        %v313 = vpack.c.b16 %v285, %v284
        %v314 = vpack.c.b16 %v287, %v286
        %v315 = vpack.c.b16 %v289, %v288
        %v316 = vpack.c.b16 %v291, %v290
        %v317 = vpack.c.b16 %v293, %v292
        %v318 = vpack.c.b16 %v295, %v294
        %v319 = vpack.c.b16 %v297, %v296
        %v320 = vpack.c.b16 %v299, %v298
        %v321 = vpack.c.b16 %v301, %v300
        %v322 = vpack.c.b16 %v303, %v302
        %v323 = vpack.c.b16 %v305, %v304
        %v324 = vpack.c.b16 %v307, %v306
        %v325 = vpack.c.b16 %v309, %v308
        %v332 = vunpack.c.l.b16 %v240
        %v333 = vunpack.c.l.b16 %v241
        %v334 = vunpack.c.l.b16 %v242
        %v335 = vunpack.c.l.b16 %v243
        %v336 = vunpack.c.l.b16 %v244
        %v337 = vunpack.c.l.b16 %v245
        %v338 = vpack.c.b16 %v333, %v332
        %v339 = vpack.c.b16 %v335, %v334
        %v340 = vpack.c.b16 %v337, %v336
        %vm344 = vcmask 392192
        %v346 = vsel %vm344, %v310, 0
        %v349 = vsel %vm344, %v311, 0
        %v352 = vsel %vm344, %v312, 0
        %v355 = vsel %vm344, %v313, 0
        %v358 = vsel %vm344, %v314, 0
        %v361 = vsel %vm344, %v315, 0
        %v364 = vsel %vm344, %v316, 0
        %v367 = vsel %vm344, %v317, 0
        %v370 = vsel %vm344, %v318, 0
        %v373 = vsel %vm344, %v319, 0
        %v376 = vsel %vm344, %v320, 0
        %v379 = vsel %vm344, %v321, 0
        %v382 = vsel %vm344, %v322, 0
        %v385 = vsel %vm344, %v323, 0
        %v388 = vsel %vm344, %v324, 0
        %v391 = vsel %vm344, %v325, 0
        %393 = vmatprep.subr.bf16.mxu0 0
        %394 = vmatpush1.bf16.msra.mxu0 %v338
        %395 = vmatprep.subr.bf16.mxu0 0
        %396 = vmatpush1.bf16.msra.mxu0 %v339
        %397 = vmatprep.subr.bf16.mxu0 0
        %398 = vmatpush1.bf16.msra.mxu0 %v340
        %399 = vmatprep.subr.bf16.mxu0 0
        %400 = vmatpush1.bf16.msra.mxu0 0
        %401 = vmatprep.subr.bf16.mxu0 0
        %402 = vmatpush1.bf16.msra.mxu0 0
        %403 = vmatprep.subr.bf16.mxu0 0
        %404 = vmatpush1.bf16.msra.mxu0 0
        %405 = vmatprep.subr.bf16.mxu0 0
        %406 = vmatpush1.bf16.msra.mxu0 0
        %407 = vmatprep.subr.bf16.mxu0 0
        %408 = vmatpush1.bf16.msra.mxu0 0
        %409 = vmatprep.subr.bf16.mxu0 0
        %410 = vmatpush1.bf16.msra.mxu0 0
        %411 = vmatprep.subr.bf16.mxu0 0
        %412 = vmatpush1.bf16.msra.mxu0 0
        %413 = vmatprep.subr.bf16.mxu0 0
        %414 = vmatpush1.bf16.msra.mxu0 0
        %415 = vmatprep.subr.bf16.mxu0 0
        %416 = vmatpush1.bf16.msra.mxu0 0
        %417 = vmatprep.subr.bf16.mxu0 0
        %418 = vmatpush1.bf16.msra.mxu0 0
        %419 = vmatprep.subr.bf16.mxu0 0
        %420 = vmatpush1.bf16.msra.mxu0 0
        %421 = vmatprep.subr.bf16.mxu0 0
        %422 = vmatpush1.bf16.msra.mxu0 0
        %423 = vmatprep.subr.bf16.mxu0 0
        %424 = vmatpush1.bf16.msra.mxu0 0
        %425 = vmatprep.mubr.bf16.mxu0 0
        %426 = vmatmul.mubr.bf16.gmra.mrb[0].mxu0 %v346
        %v427 = vpop.f32.mrb[0].mxu0
        %v428 = vadd.f32 0.0, %v427
        %v429 = vpop.f32.mrb[0].mxu0
        %v430 = vpop.f32.mrb[0].mxu0
        %v431 = vadd.f32 0.0, %v430
        %v432 = vpop.f32.mrb[0].mxu0
        %433 = vmatprep.mubr.bf16.mxu0 0
        %434 = vmatmul.mubr.bf16.gmra.mrb[0].mxu0 %v349
        %v435 = vpop.f32.mrb[0].mxu0
        %v436 = vadd.f32 0.0, %v435
        %v437 = vpop.f32.mrb[0].mxu0
        %v438 = vpop.f32.mrb[0].mxu0
        %v439 = vadd.f32 0.0, %v438
        %v440 = vpop.f32.mrb[0].mxu0
        %441 = vmatprep.mubr.bf16.mxu0 0
        %442 = vmatmul.mubr.bf16.gmra.mrb[0].mxu0 %v352
        %v443 = vpop.f32.mrb[0].mxu0
        %v444 = vadd.f32 0.0, %v443
        %v445 = vpop.f32.mrb[0].mxu0
        %v446 = vpop.f32.mrb[0].mxu0
        %v447 = vadd.f32 0.0, %v446
        %v448 = vpop.f32.mrb[0].mxu0
        %449 = vmatprep.mubr.bf16.mxu0 0
        %450 = vmatmul.mubr.bf16.gmra.mrb[0].mxu0 %v355
        %v451 = vpop.f32.mrb[0].mxu0
        %v452 = vadd.f32 0.0, %v451
        %v453 = vpop.f32.mrb[0].mxu0
        %v454 = vpop.f32.mrb[0].mxu0
        %v455 = vadd.f32 0.0, %v454
        %v456 = vpop.f32.mrb[0].mxu0
        %457 = vmatprep.mubr.bf16.mxu0 0
        %458 = vmatmul.mubr.bf16.gmra.mrb[0].mxu0 %v358
        %v459 = vpop.f32.mrb[0].mxu0
        %v460 = vadd.f32 0.0, %v459
        %v461 = vpop.f32.mrb[0].mxu0
        %v462 = vpop.f32.mrb[0].mxu0
        %v463 = vadd.f32 0.0, %v462
        %v464 = vpop.f32.mrb[0].mxu0
        %465 = vmatprep.mubr.bf16.mxu0 0
        %466 = vmatmul.mubr.bf16.gmra.mrb[0].mxu0 %v361
        %v467 = vpop.f32.mrb[0].mxu0
        %v468 = vadd.f32 0.0, %v467
        %v469 = vpop.f32.mrb[0].mxu0
        %v470 = vpop.f32.mrb[0].mxu0
        %v471 = vadd.f32 0.0, %v470
        %v472 = vpop.f32.mrb[0].mxu0
        %473 = vmatprep.mubr.bf16.mxu0 0
        %474 = vmatmul.mubr.bf16.gmra.mrb[0].mxu0 %v364
        %v475 = vpop.f32.mrb[0].mxu0
        %v476 = vadd.f32 0.0, %v475
        %v477 = vpop.f32.mrb[0].mxu0
        %v478 = vpop.f32.mrb[0].mxu0
        %v479 = vadd.f32 0.0, %v478
        %v480 = vpop.f32.mrb[0].mxu0
        %481 = vmatprep.mubr.bf16.mxu0 0
        %482 = vmatmul.mubr.bf16.gmra.mrb[0].mxu0 %v367
        %v483 = vpop.f32.mrb[0].mxu0
        %v484 = vadd.f32 0.0, %v483
        %v485 = vpop.f32.mrb[0].mxu0
        %v486 = vpop.f32.mrb[0].mxu0
        %v487 = vadd.f32 0.0, %v486
        %v488 = vpop.f32.mrb[0].mxu0
        %489 = vmatprep.mubr.bf16.mxu0 0
        %490 = vmatmul.mubr.bf16.gmra.mrb[0].mxu0 %v370
        %v491 = vpop.f32.mrb[0].mxu0
        %v492 = vadd.f32 0.0, %v491
        %v493 = vpop.f32.mrb[0].mxu0
        %v494 = vpop.f32.mrb[0].mxu0
        %v495 = vadd.f32 0.0, %v494
        %v496 = vpop.f32.mrb[0].mxu0
        %497 = vmatprep.mubr.bf16.mxu0 0
        %498 = vmatmul.mubr.bf16.gmra.mrb[0].mxu0 %v373
        %v499 = vpop.f32.mrb[0].mxu0
        %v500 = vadd.f32 0.0, %v499
        %v501 = vpop.f32.mrb[0].mxu0
        %v502 = vpop.f32.mrb[0].mxu0
        %v503 = vadd.f32 0.0, %v502
        %v504 = vpop.f32.mrb[0].mxu0
        %505 = vmatprep.mubr.bf16.mxu0 0
        %506 = vmatmul.mubr.bf16.gmra.mrb[0].mxu0 %v376
        %v507 = vpop.f32.mrb[0].mxu0
        %v508 = vadd.f32 0.0, %v507
        %v509 = vpop.f32.mrb[0].mxu0
        %v510 = vpop.f32.mrb[0].mxu0
        %v511 = vadd.f32 0.0, %v510
        %v512 = vpop.f32.mrb[0].mxu0
        %513 = vmatprep.mubr.bf16.mxu0 0
        %514 = vmatmul.mubr.bf16.gmra.mrb[0].mxu0 %v379
        %v515 = vpop.f32.mrb[0].mxu0
        %v516 = vadd.f32 0.0, %v515
        %v517 = vpop.f32.mrb[0].mxu0
        %v518 = vpop.f32.mrb[0].mxu0
        %v519 = vadd.f32 0.0, %v518
        %v520 = vpop.f32.mrb[0].mxu0
        %521 = vmatprep.mubr.bf16.mxu0 0
        %522 = vmatmul.mubr.bf16.gmra.mrb[0].mxu0 %v382
        %v523 = vpop.f32.mrb[0].mxu0
        %v524 = vadd.f32 0.0, %v523
        %v525 = vpop.f32.mrb[0].mxu0
        %v526 = vpop.f32.mrb[0].mxu0
        %v527 = vadd.f32 0.0, %v526
        %v528 = vpop.f32.mrb[0].mxu0
        %529 = vmatprep.mubr.bf16.mxu0 0
        %530 = vmatmul.mubr.bf16.gmra.mrb[0].mxu0 %v385
        %v531 = vpop.f32.mrb[0].mxu0
        %v532 = vadd.f32 0.0, %v531
        %v533 = vpop.f32.mrb[0].mxu0
        %v534 = vpop.f32.mrb[0].mxu0
        %v535 = vadd.f32 0.0, %v534
        %v536 = vpop.f32.mrb[0].mxu0
        %537 = vmatprep.mubr.bf16.mxu0 0
        %538 = vmatmul.mubr.bf16.gmra.mrb[0].mxu0 %v388
        %v539 = vpop.f32.mrb[0].mxu0
        %v540 = vadd.f32 0.0, %v539
        %v541 = vpop.f32.mrb[0].mxu0
        %v542 = vpop.f32.mrb[0].mxu0
        %v543 = vadd.f32 0.0, %v542
        %v544 = vpop.f32.mrb[0].mxu0
        %545 = vmatprep.mubr.bf16.mxu0 0
        %546 = vmatmul.mubr.bf16.gmra.mrb[0].mxu0 %v391
        %v547 = vpop.f32.mrb[0].mxu0
        %v548 = vadd.f32 0.0, %v547
        %v549 = vpop.f32.mrb[0].mxu0
        %v550 = vpop.f32.mrb[0].mxu0
        %v551 = vadd.f32 0.0, %v550
        %v552 = vpop.f32.mrb[0].mxu0
        %553 = vdwg.mxu0
        %v554 = vld [vmem:[%s185] sm:$0xff]
        %v555 = vadd.f32 %v428, %v431
        %v556 = vadd.f32 %v555, %v436
        %v557 = vadd.f32 %v556, %v439
        %v558 = vadd.f32 %v557, %v444
        %v559 = vadd.f32 %v558, %v447
        %v560 = vadd.f32 %v559, %v452
        %v561 = vadd.f32 %v560, %v455
        %v562 = vadd.f32 %v561, %v460
        %v563 = vadd.f32 %v562, %v463
        %v564 = vadd.f32 %v563, %v468
        %v565 = vadd.f32 %v564, %v471
        %v566 = vadd.f32 %v565, %v476
        %v567 = vadd.f32 %v566, %v479
        %v568 = vadd.f32 %v567, %v484
        %v569 = vadd.f32 %v568, %v487
        %v570 = vadd.f32 %v569, %v492
        %v571 = vadd.f32 %v570, %v495
        %v572 = vadd.f32 %v571, %v500
        %v573 = vadd.f32 %v572, %v503
        %v574 = vadd.f32 %v573, %v508
        %v575 = vadd.f32 %v574, %v511
        %v576 = vadd.f32 %v575, %v516
        %v577 = vadd.f32 %v576, %v519
        %v578 = vadd.f32 %v577, %v524
        %v579 = vadd.f32 %v578, %v527
        %v580 = vadd.f32 %v579, %v532
        %v581 = vadd.f32 %v580, %v535
        %v582 = vadd.f32 %v581, %v540
        %v583 = vadd.f32 %v582, %v543
        %v584 = vadd.f32 %v583, %v548
        %v585 = vadd.f32 %v584, %v551
        %v586 = vadd.f32 %v554, %v585
        %587 = vst [vmem:[%s185] sm:$0xff] %v586
        %v588 = vld [vmem:[%s192] sm:$0xff]
        %v589 = vmul.f32 %v428, %v428
        %v590 = vmul.f32 %v431, %v431
        %v591 = vmul.f32 %v436, %v436
        %v592 = vmul.f32 %v439, %v439
        %v593 = vmul.f32 %v444, %v444
        %v594 = vmul.f32 %v447, %v447
        %v595 = vmul.f32 %v452, %v452
        %v596 = vmul.f32 %v455, %v455
        %v597 = vmul.f32 %v460, %v460
        %v598 = vmul.f32 %v463, %v463
        %v599 = vmul.f32 %v468, %v468
        %v600 = vmul.f32 %v471, %v471
        %v601 = vmul.f32 %v476, %v476
        %v602 = vmul.f32 %v479, %v479
        %v603 = vmul.f32 %v484, %v484
        %v604 = vmul.f32 %v487, %v487
        %v605 = vmul.f32 %v492, %v492
        %v606 = vmul.f32 %v495, %v495
        %v607 = vmul.f32 %v500, %v500
        %v608 = vmul.f32 %v503, %v503
        %v609 = vmul.f32 %v508, %v508
        %v610 = vmul.f32 %v511, %v511
        %v611 = vmul.f32 %v516, %v516
        %v612 = vmul.f32 %v519, %v519
        %v613 = vmul.f32 %v524, %v524
        %v614 = vmul.f32 %v527, %v527
        %v615 = vmul.f32 %v532, %v532
        %v616 = vmul.f32 %v535, %v535
        %v617 = vmul.f32 %v540, %v540
        %v618 = vmul.f32 %v543, %v543
        %v619 = vmul.f32 %v548, %v548
        %v620 = vmul.f32 %v551, %v551
        %v621 = vadd.f32 %v589, %v590
        %v622 = vadd.f32 %v621, %v591
        %v623 = vadd.f32 %v622, %v592
        %v624 = vadd.f32 %v623, %v593
        %v625 = vadd.f32 %v624, %v594
        %v626 = vadd.f32 %v625, %v595
        %v627 = vadd.f32 %v626, %v596
        %v628 = vadd.f32 %v627, %v597
        %v629 = vadd.f32 %v628, %v598
        %v630 = vadd.f32 %v629, %v599
        %v631 = vadd.f32 %v630, %v600
        %v632 = vadd.f32 %v631, %v601
        %v633 = vadd.f32 %v632, %v602
        %v634 = vadd.f32 %v633, %v603
        %v635 = vadd.f32 %v634, %v604
        %v636 = vadd.f32 %v635, %v605
        %v637 = vadd.f32 %v636, %v606
        %v638 = vadd.f32 %v637, %v607
        %v639 = vadd.f32 %v638, %v608
        %v640 = vadd.f32 %v639, %v609
        %v641 = vadd.f32 %v640, %v610
        %v642 = vadd.f32 %v641, %v611
        %v643 = vadd.f32 %v642, %v612
        %v644 = vadd.f32 %v643, %v613
        %v645 = vadd.f32 %v644, %v614
        %v646 = vadd.f32 %v645, %v615
        %v647 = vadd.f32 %v646, %v616
        %v648 = vadd.f32 %v647, %v617
        %v649 = vadd.f32 %v648, %v618
        %v650 = vadd.f32 %v649, %v619
        %v651 = vadd.f32 %v650, %v620
        %v652 = vadd.f32 %v588, %v651
        %653 = vst [vmem:[%s192] sm:$0xff] %v652
        %s654 = sand.u32 %s90, 1
        %s655 = scalar_lea.sflag [#allocation3], %s654
        %s656 = sand.u32 %s90, 1
        %s657 = smul.addr %s656, 8
        %s658 = scalar_lea.vmem [#allocation2], %s657
        %s659 = sand.u32 %s116, 1
        %s660 = scalar_lea.sflag [#allocation5], %s659
        %s661 = sand.u32 %s116, 1
        %s662 = smul.addr %s661, 8
        %s663 = scalar_lea.vmem [#allocation4], %s662
        // Predicated region
        $region33: #{tpu_custom_call.1} parent=27 // pred_check
          %p664 = pneg %p100
        $region34: #{tpu_custom_call.1} parent=27 // pred_check_branch
          %666 = sbr.rel (%p664) target = $region36
        $region35: #{tpu_custom_call.1} parent=27 // pred_region
          %s668 = ssub.s32 128, 128
          %669 = vsyncadd %s655, %s668
          %s670 = smul.addr %s25, 128
          %s671 = scalar_lea.hbm %s2, %s670
          %s673 = sshll.u32 %s658, 4
          %s674 = int_to_ptr.vmem [resolvable:$true] %s673
          %676 = dma.vmem_to_hbm [thread:$0]  %s674, 128, %s671, %s655
        $region36: #{tpu_custom_call.1} parent=27 // pred_fallthru
          _
        // Predicated region
        $region37: #{tpu_custom_call.1} parent=27 // pred_check
          %p677 = pneg %p126
        $region38: #{tpu_custom_call.1} parent=27 // pred_check_branch
          %679 = sbr.rel (%p677) target = $region40
        $region39: #{tpu_custom_call.1} parent=27 // pred_region
          %s681 = ssub.s32 128, 128
          %682 = vsyncadd %s660, %s681
          %s683 = smul.addr %s25, 128
          %s684 = scalar_lea.hbm %s3, %s683
          %s686 = sshll.u32 %s663, 4
          %s687 = int_to_ptr.vmem [resolvable:$true] %s686
          %689 = dma.vmem_to_hbm [thread:$0]  %s687, 128, %s684, %s660
        $region40: #{tpu_custom_call.1} parent=27 // pred_fallthru
          _
      $region28: #{tpu_custom_call.1} parent=5 // pred_fallthru
        _
      %p690 = scmp.le.s32.totalorder 2, %s16
      // Predicated region
      $region41: #{tpu_custom_call.1} parent=5 // pred_check
        %p691 = pneg %p690
      $region42: #{tpu_custom_call.1} parent=5 // pred_check_branch
        %693 = sbr.rel (%p691) target = $region44
      $region43: #{tpu_custom_call.1} parent=5 // pred_region
        %s694 = ssub.s32 %s16, 2
        // Predicated region
        $region45: #{tpu_custom_call.1} parent=43 // pred_check
          %p695 = pneg %p106
        $region46: #{tpu_custom_call.1} parent=43 // pred_check_branch
          %697 = sbr.rel (%p695) target = $region48
        $region47: #{tpu_custom_call.1} parent=43 // pred_region
          %s698 = sand.u32 %s91, 1
          %s699 = scalar_lea.sflag [#allocation3], %s698
          %s700 = sand.u32 %s91, 1
          %s701 = smul.addr %s700, 8
          %s702 = scalar_lea.vmem [#allocation2], %s701
          %703 = dma.done %s699, 128
        $region48: #{tpu_custom_call.1} parent=43 // pred_fallthru
          _
        // Predicated region
        $region49: #{tpu_custom_call.1} parent=43 // pred_check
          %p704 = pneg %p132
        $region50: #{tpu_custom_call.1} parent=43 // pred_check_branch
          %706 = sbr.rel (%p704) target = $region52
        $region51: #{tpu_custom_call.1} parent=43 // pred_region
          %s707 = sand.u32 %s117, 1
          %s708 = scalar_lea.sflag [#allocation5], %s707
          %s709 = sand.u32 %s117, 1
          %s710 = smul.addr %s709, 8
          %s711 = scalar_lea.vmem [#allocation4], %s710
          %712 = dma.done %s708, 128
        $region52: #{tpu_custom_call.1} parent=43 // pred_fallthru
          _
      $region44: #{tpu_custom_call.1} parent=5 // pred_fallthru
        _
    $region6: #{tpu_custom_call.1} parent=1 // loop_footer
      %s20 = sadd.s32 1, %s16
    $region7: #{tpu_custom_call.1} parent=1 // loop_footer_branch
      %15 = sbr.rel target = $region3
    $region8: #{tpu_custom_call.1} parent=1 // loop_exit
      _
    %713 = vsyncpa [#allocation3], 1
    %s714 = scalar_lea.sflag [#allocation3], 1
    %715 = vsyncpa %s714, 1
    %716 = vsyncpa [#allocation5], 1
    %s717 = scalar_lea.sflag [#allocation5], 1
    %718 = vsyncpa %s717, 1

</llo_original>
